<compile_context>
chip_gen: v6e
topology: v6e:2x2x1
jax: 0.10.0
libtpu: 0.0.40
codegen_flags: <defaults>
</compile_context>

<pallas_src>
import functools

import jax
import jax.numpy as jnp
from jax.experimental import pallas as pl
from jax.experimental.pallas import tpu as pltpu


def _round_up(x, m):
    return ((x + m - 1) // m) * m


def _cdiv(a, b):
    return (a + b - 1) // b


def _vmem_capacity_bytes():
    """Physical VMEM per core; v7x-safe fallback if the query is unavailable."""
    try:
        return int(pltpu.get_tpu_info().vmem_capacity_bytes)
    except Exception:
        return 64 << 20  # assume v7x (smallest VMEM among supported generations)


def _choose_tiling(n_rows, d, itemsize, requested_row_tile):
    """Pick the row tile and a VMEM limit sized to the real working set."""
    d_pad = _round_up(max(d, 1), 128)           # lane padding of (rt, D) blocks
    granule = 8 if itemsize >= 4 else 16        # sublane multiple (16 for packed dtypes)

    # Per-row VMEM bytes:
    #   pipelined (double-buffered): 3 embedding tiles + lane-padded (rt, 2) mask
    #   temporaries (single copy):   ~3 full-width f32 rows (diffs, squares, upcasts)
    per_row_pipe = 3 * d_pad * itemsize + 128 * 4
    per_row_temp = 3 * d_pad * 4

    cap = _vmem_capacity_bytes()
    if cap >= (100 << 20):                      # v5e / v6e: 128 MiB physical VMEM
        footprint_budget = 48 << 20             # ~24 MiB per pipeline stage
    else:                                       # v7x: 64 MiB physical VMEM
        footprint_budget = 36 << 20             # ~16-18 MiB per pipeline stage

    n_rows = max(n_rows, 1)
    if requested_row_tile is None:
        rt = footprint_budget // (2 * per_row_pipe + per_row_temp)
        rt = max(granule, min(16384, (rt // granule) * granule))
        # Balance tiles so padding never exceeds ~granule rows per tile.
        n_tiles = _cdiv(n_rows, rt)
        rt = _round_up(_cdiv(n_rows, n_tiles), granule)
    else:
        rt = max(granule, _round_up(int(requested_row_tile), granule))
    rt = min(rt, _round_up(n_rows, granule))    # don't tile past the row count

    needed = 2 * rt * per_row_pipe + rt * per_row_temp + (4 << 20)   # + headroom
    vmem_bytes = int(min(max(needed, 16 << 20), int(cap * 0.9)))
    return rt, vmem_bytes


def _pairwise_loss_kernel(a_ref, p_ref, n_ref, m_ref, out_ref, *, margin):
    """One row tile -> one lane-dense (8, 128) block of per-tile partial sums.

    a_ref / p_ref / n_ref : (TM, D) embedding tiles (VMEM)
    m_ref                 : (TM, 2) packed masks [pos_mask, neg_mask] (VMEM)
    out_ref               : (1, 8, 128); lane 0 carries the masked positive
                            partial sum, lane 1 the masked negative partial sum.
    """
    a = a_ref[...].astype(jnp.float32)
    m = m_ref[...].astype(jnp.float32)

    # Positive branch first so only ~2 full-width f32 temporaries are live at once.
    dp = a - p_ref[...].astype(jnp.float32)
    pos_dist = jnp.sqrt(jnp.sum(dp * dp, axis=-1, keepdims=True))       # (TM, 1)
    pos_partial = jnp.sum(pos_dist * m[:, 0:1])                         # scalar

    dn = a - n_ref[...].astype(jnp.float32)
    neg_dist = jnp.sqrt(jnp.sum(dn * dn, axis=-1, keepdims=True))       # (TM, 1)
    neg_partial = jnp.sum(
        jnp.maximum(jnp.float32(margin) - neg_dist, 0.0) * m[:, 1:2])   # scalar

    lane = jax.lax.broadcasted_iota(jnp.int32, (8, 128), dimension=1)
    out_ref[0] = jnp.where(lane == 0, pos_partial,
                           jnp.where(lane == 1, neg_partial, jnp.float32(0.0)))


def pairwise_loss(anchor, positive, negative, positive_mask, negative_mask,
                  margin=1.0, row_tile=None):
    """anchor/positive/negative: (..., D); masks: (...). Returns (pos_loss, neg_loss)."""
    D = anchor.shape[-1]
    a = anchor.reshape(-1, D)
    p = positive.reshape(-1, D)
    n = negative.reshape(-1, D)
    N = a.shape[0]

    pm = positive_mask.reshape(-1).astype(jnp.float32)
    nm = negative_mask.reshape(-1).astype(jnp.float32)
    m = jnp.stack([pm, nm], axis=-1)                  # (N, 2) packed masks

    itemsize = jnp.dtype(anchor.dtype).itemsize
    rt, vmem_bytes = _choose_tiling(N, D, itemsize, row_tile)
    n_pad = _round_up(max(N, 1), rt)
    pad = n_pad - N
    if pad:
        # Padded rows: zero embeddings and zero masks -> contribute nothing.
        a = jnp.pad(a, ((0, pad), (0, 0)))
        p = jnp.pad(p, ((0, pad), (0, 0)))
        n = jnp.pad(n, ((0, pad), (0, 0)))
        m = jnp.pad(m, ((0, pad), (0, 0)))
    n_tiles = n_pad // rt

    emb_spec = pl.BlockSpec((rt, D), lambda i: (i, 0))
    msk_spec = pl.BlockSpec((rt, 2), lambda i: (i, 0))
    out_spec = pl.BlockSpec((1, 8, 128), lambda i: (i, 0, 0))

    partials = pl.pallas_call(
        functools.partial(_pairwise_loss_kernel, margin=float(margin)),
        out_shape=jax.ShapeDtypeStruct((n_tiles, 8, 128), jnp.float32),
        grid_spec=pltpu.PrefetchScalarGridSpec(
            num_scalar_prefetch=0,
            grid=(n_tiles,),
            in_specs=[emb_spec, emb_spec, emb_spec, msk_spec],
            out_specs=out_spec,
        ),
        compiler_params=pltpu.CompilerParams(
            dimension_semantics=("parallel",),        # independent tiles; megacore-friendly
            vmem_limit_bytes=vmem_bytes,
        ),
    )(a, p, n, m)

    # Tiny final reduction + division in the wrapper (one scalar pair per tile).
    pos_sum = jnp.sum(partials[:, 0, 0])
    neg_sum = jnp.sum(partials[:, 0, 1])
    return pos_sum / jnp.sum(pm), neg_sum / jnp.sum(nm)


def _reference(anchor, positive, negative, positive_mask, negative_mask, margin=1.0):
    pos_dist = jnp.sqrt(jnp.sum((anchor - positive) ** 2, axis=-1))
    neg_dist = jnp.sqrt(jnp.sum((anchor - negative) ** 2, axis=-1))
    pos_loss = pos_dist * positive_mask
    neg_loss = jax.nn.relu(margin - neg_dist) * negative_mask
    return (pos_loss.sum() / positive_mask.sum(),
            neg_loss.sum() / negative_mask.sum())


if __name__ == "__main__":
    key = jax.random.PRNGKey(0)
    B, S, D = 2, 8, 32
    k1, k2, k3, k4, k5 = jax.random.split(key, 5)

    anchor = jax.random.normal(k1, (B, S, D), dtype=jnp.float32)
    positive = jax.random.normal(k2, (B, S, D), dtype=jnp.float32)
    negative = jax.random.normal(k3, (B, S, D), dtype=jnp.float32)
    positive_mask = (jax.random.uniform(k4, (B, S)) > 0.3).astype(jnp.float32)
    negative_mask = (jax.random.uniform(k5, (B, S)) > 0.3).astype(jnp.float32)
    # Ensure masks are non-degenerate (avoid division by zero, as in PyTorch use).
    positive_mask = positive_mask.at[0, 0].set(1.0)
    negative_mask = negative_mask.at[0, 0].set(1.0)

    pos_loss, neg_loss = pairwise_loss(anchor, positive, negative,
                                       positive_mask, negative_mask, margin=1.0)
    jax.block_until_ready((pos_loss, neg_loss))

    ref_pos, ref_neg = _reference(anchor, positive, negative,
                                  positive_mask, negative_mask, margin=1.0)
    assert jnp.allclose(pos_loss, ref_pos, rtol=1e-5, atol=1e-5)
    assert jnp.allclose(neg_loss, ref_neg, rtol=1e-5, atol=1e-5)

    # Also exercise a ragged / multi-tile path (row padding + small explicit tile).
    pos2, neg2 = pairwise_loss(anchor, positive, negative,
                               positive_mask, negative_mask, margin=1.0, row_tile=8)
    jax.block_until_ready((pos2, neg2))
    assert jnp.allclose(pos2, ref_pos, rtol=1e-5, atol=1e-5)
    assert jnp.allclose(neg2, ref_neg, rtol=1e-5, atol=1e-5)

    print("KERNEL_OK")
</pallas_src>

<mosaic_0001>
module attributes {stable_mosaic.version = 11 : i64} {
  func.func @_pairwise_loss_kernel(%arg0: i32, %arg1: memref<16x32xf32, #tpu.memory_space<vmem>>, %arg2: memref<16x32xf32, #tpu.memory_space<vmem>>, %arg3: memref<16x32xf32, #tpu.memory_space<vmem>>, %arg4: memref<16x2xf32, #tpu.memory_space<vmem>>, %arg5: memref<1x8x128xf32, #tpu.memory_space<vmem>>) attributes {dimension_semantics = [#tpu.dimension_semantics<parallel>], iteration_bounds = array<i64: 1>, scalar_prefetch = 0 : i64, scratch_operands = 0 : i64, tpu.core_type = #tpu.core_type<tc>, window_params = [{transform_indices = @transform_0, window_bounds = array<i64: 16, 32>}, {transform_indices = @transform_1, window_bounds = array<i64: 16, 32>}, {transform_indices = @transform_2, window_bounds = array<i64: 16, 32>}, {transform_indices = @transform_3, window_bounds = array<i64: 16, 2>}, {transform_indices = @transform_4, window_bounds = array<i64: 1, 8, 128>}]} {
    %c0 = arith.constant 0 : index
    %c0_0 = arith.constant 0 : index
    %0 = vector.load %arg1[%c0, %c0_0] : memref<16x32xf32, #tpu.memory_space<vmem>>, vector<16x32xf32>
    %c0_1 = arith.constant 0 : index
    %c0_2 = arith.constant 0 : index
    %1 = vector.load %arg4[%c0_1, %c0_2] : memref<16x2xf32, #tpu.memory_space<vmem>>, vector<16x2xf32>
    %c0_3 = arith.constant 0 : index
    %c0_4 = arith.constant 0 : index
    %2 = vector.load %arg2[%c0_3, %c0_4] : memref<16x32xf32, #tpu.memory_space<vmem>>, vector<16x32xf32>
    %3 = arith.subf %0, %2 : vector<16x32xf32>
    %4 = arith.mulf %3, %3 : vector<16x32xf32>
    %cst = arith.constant dense<0.000000e+00> : vector<16xf32>
    %5 = vector.multi_reduction <add>, %4, %cst [1] : vector<16x32xf32> to vector<16xf32>
    %6 = vector.shape_cast %5 : vector<16xf32> to vector<16x1xf32>
    %7 = math.sqrt %6 : vector<16x1xf32>
    %8 = vector.extract_strided_slice %1 {offsets = [0, 0], sizes = [16, 1], strides = [1, 1]} : vector<16x2xf32> to vector<16x1xf32>
    %9 = arith.mulf %7, %8 : vector<16x1xf32>
    %10 = vector.shape_cast %9 : vector<16x1xf32> to vector<1x16x1xf32>
    %cst_5 = arith.constant dense<0.000000e+00> : vector<1xf32>
    %11 = vector.multi_reduction <add>, %10, %cst_5 [1, 2] : vector<1x16x1xf32> to vector<1xf32>
    %12 = vector.shape_cast %11 : vector<1xf32> to vector<1x1x1xf32>
    %13 = vector.extract %12[0, 0, 0] : f32 from vector<1x1x1xf32>
    %c0_6 = arith.constant 0 : index
    %c0_7 = arith.constant 0 : index
    %14 = vector.load %arg3[%c0_6, %c0_7] : memref<16x32xf32, #tpu.memory_space<vmem>>, vector<16x32xf32>
    %15 = arith.subf %0, %14 : vector<16x32xf32>
    %16 = arith.mulf %15, %15 : vector<16x32xf32>
    %cst_8 = arith.constant dense<0.000000e+00> : vector<16xf32>
    %17 = vector.multi_reduction <add>, %16, %cst_8 [1] : vector<16x32xf32> to vector<16xf32>
    %18 = vector.shape_cast %17 : vector<16xf32> to vector<16x1xf32>
    %19 = math.sqrt %18 : vector<16x1xf32>
    %cst_9 = arith.constant 1.000000e+00 : f32
    %20 = vector.broadcast %cst_9 : f32 to vector<16x1xf32>
    %21 = arith.subf %20, %19 : vector<16x1xf32>
    %cst_10 = arith.constant 0.000000e+00 : f32
    %22 = vector.broadcast %cst_10 : f32 to vector<16x1xf32>
    %23 = arith.maximumf %21, %22 : vector<16x1xf32>
    %24 = vector.extract_strided_slice %1 {offsets = [0, 1], sizes = [16, 1], strides = [1, 1]} : vector<16x2xf32> to vector<16x1xf32>
    %25 = arith.mulf %23, %24 : vector<16x1xf32>
    %26 = vector.shape_cast %25 : vector<16x1xf32> to vector<1x16x1xf32>
    %cst_11 = arith.constant dense<0.000000e+00> : vector<1xf32>
    %27 = vector.multi_reduction <add>, %26, %cst_11 [1, 2] : vector<1x16x1xf32> to vector<1xf32>
    %28 = vector.shape_cast %27 : vector<1xf32> to vector<1x1x1xf32>
    %29 = vector.extract %28[0, 0, 0] : f32 from vector<1x1x1xf32>
    %30 = tpu.iota {dimensions = array<i32: 1>} : vector<8x128xi32>
    %c0_i32 = arith.constant 0 : i32
    %31 = vector.broadcast %c0_i32 : i32 to vector<8x128xi32>
    %32 = arith.cmpi eq, %30, %31 : vector<8x128xi32>
    %c1_i32 = arith.constant 1 : i32
    %33 = vector.broadcast %c1_i32 : i32 to vector<8x128xi32>
    %34 = arith.cmpi eq, %30, %33 : vector<8x128xi32>
    %cst_12 = arith.constant 0.000000e+00 : f32
    %35 = vector.broadcast %29 : f32 to vector<8x128xf32>
    %36 = vector.broadcast %cst_12 : f32 to vector<8x128xf32>
    %37 = arith.select %34, %35, %36 : vector<8x128xi1>, vector<8x128xf32>
    %38 = vector.broadcast %13 : f32 to vector<8x128xf32>
    %39 = arith.select %32, %38, %37 : vector<8x128xi1>, vector<8x128xf32>
    %c0_13 = arith.constant 0 : index
    %c0_14 = arith.constant 0 : index
    %c0_15 = arith.constant 0 : index
    %40 = vector.load %arg5[%c0_13, %c0_14, %c0_15] : memref<1x8x128xf32, #tpu.memory_space<vmem>>, vector<1x8x128xf32>
    %41 = vector.shape_cast %40 : vector<1x8x128xf32> to vector<8x128xf32>
    %42 = vector.shape_cast %39 : vector<8x128xf32> to vector<1x8x128xf32>
    tpu.vector_store %arg5[%c0_13, %c0_14, %c0_15], %42 {strides = array<i32>} : memref<1x8x128xf32, #tpu.memory_space<vmem>>, vector<1x8x128xf32>,
    return
  }
  func.func @transform_0(%arg0: i32) -> (i32, i32) {
    %c0_i32 = arith.constant 0 : i32
    %c0_i32_0 = arith.constant 0 : i32
    return %arg0, %c0_i32 : i32, i32
  }
  func.func @transform_1(%arg0: i32) -> (i32, i32) {
    %c0_i32 = arith.constant 0 : i32
    %c0_i32_0 = arith.constant 0 : i32
    return %arg0, %c0_i32 : i32, i32
  }
  func.func @transform_2(%arg0: i32) -> (i32, i32) {
    %c0_i32 = arith.constant 0 : i32
    %c0_i32_0 = arith.constant 0 : i32
    return %arg0, %c0_i32 : i32, i32
  }
  func.func @transform_3(%arg0: i32) -> (i32, i32) {
    %c0_i32 = arith.constant 0 : i32
    %c0_i32_0 = arith.constant 0 : i32
    return %arg0, %c0_i32 : i32, i32
  }
  func.func @transform_4(%arg0: i32) -> (i32, i32, i32) {
    %c0_i32 = arith.constant 0 : i32
    %c0_i32_0 = arith.constant 0 : i32
    %c0_i32_1 = arith.constant 0 : i32
    return %arg0, %c0_i32, %c0_i32_0 : i32, i32, i32
  }
}

</mosaic_0001>

<llo_original>
// kernel: tpu_custom_call.1
$region0: #{tpu_custom_call.1}
  #allocation0 [shape = 'u32[]', space=smem, size = 0x4, offset = 0x4, fixed_abs, tag = 'smem constant byte address 0x4 - core index']
  #allocation1 [shape = 'u32[144,128]{1,0:T(1,128)}', space=vmem, size = 0x12000, scoped, tag = 'internal scratch']
  %s0 = inlined_call_operand.vmem [shape: f32[16,32], index: 0, kind: input, shape index: {}]
  %s1 = inlined_call_operand.hbm [shape: f32[16,32], index: 1, kind: input, shape index: {}]
  %s2 = inlined_call_operand.hbm [shape: f32[16,32], index: 2, kind: input, shape index: {}]
  %s3 = inlined_call_operand.vmem [shape: f32[16,2], index: 3, kind: input, shape index: {}]
  %s4 = inlined_call_operand.hbm [shape: f32[1,8,128], index: 4, kind: output, shape index: {}]
  %s5 = sld [smem:[#allocation0]]
  $region34: #{tpu_custom_call.1} parent=0
    _
  %s7 = ssub.s32 1, %s5
  %s8 = scalar_select 0, %s7, %s5
  $region1: #{tpu_custom_call.1} parent=0
    #allocation2 [shape = 'u8[8192]{0}', space=vmem, size = 0x2000, scoped, tag = 'input window, operand 1, single buffered']
    #allocation3 [shape = 's32[1]{0}', space=sflag, size = 0x4, scoped, tag = 'scoped memory for tpu_custom_call.1']
    #allocation4 [shape = 's32[1]{0}', space=sflag, size = 0x4, scoped, tag = 'scoped memory for tpu_custom_call.1']
    #allocation5 [shape = 'u8[8192]{0}', space=vmem, size = 0x2000, scoped, tag = 'input window, operand 2, single buffered']
    #allocation6 [shape = 's32[1]{0}', space=sflag, size = 0x4, scoped, tag = 'scoped memory for tpu_custom_call.1']
    #allocation7 [shape = 'u8[4096]{0}', space=vmem, size = 0x1000, scoped, tag = 'output window, operand 0, single buffered']
    %9 = vsyncpa [#allocation3], 0
    %10 = vsyncpa [#allocation6], 0
    %11 = vsyncpa [#allocation4], 0
    // Predicated region
    $region2: #{tpu_custom_call.1} parent=1 // pred_check
      _
    $region3: #{tpu_custom_call.1} parent=1 // pred_check_branch
      %13 = sbr.rel (0) target = $region5
    $region4: #{tpu_custom_call.1} parent=1 // pred_region
      _
    $region5: #{tpu_custom_call.1} parent=1 // pred_fallthru
      _
    // Predicated region
    $region6: #{tpu_custom_call.1} parent=1 // pred_check
      _
    $region7: #{tpu_custom_call.1} parent=1 // pred_check_branch
      %15 = sbr.rel (0) target = $region9
    $region8: #{tpu_custom_call.1} parent=1 // pred_region
      %s17 = ssub.s32 256, 256
      %18 = vsyncadd [#allocation3], %s17
      %s19 = sshll.u32 [#allocation2], 4
      %s20 = int_to_ptr.vmem [resolvable:$true] %s19
      %25 = dma.hbm_to_vmem [thread:$0]  %s1, 256, %s20, [#allocation3], 128, 128, 8
    $region9: #{tpu_custom_call.1} parent=1 // pred_fallthru
      _
    // Predicated region
    $region10: #{tpu_custom_call.1} parent=1 // pred_check
      _
    $region11: #{tpu_custom_call.1} parent=1 // pred_check_branch
      %27 = sbr.rel (0) target = $region13
    $region12: #{tpu_custom_call.1} parent=1 // pred_region
      %s29 = ssub.s32 256, 256
      %30 = vsyncadd [#allocation6], %s29
      %s31 = sshll.u32 [#allocation5], 4
      %s32 = int_to_ptr.vmem [resolvable:$true] %s31
      %37 = dma.hbm_to_vmem [thread:$0]  %s2, 256, %s32, [#allocation6], 128, 128, 8
    $region13: #{tpu_custom_call.1} parent=1 // pred_fallthru
      _
    // Predicated region
    $region14: #{tpu_custom_call.1} parent=1 // pred_check
      _
    $region15: #{tpu_custom_call.1} parent=1 // pred_check_branch
      %39 = sbr.rel (0) target = $region17
    $region16: #{tpu_custom_call.1} parent=1 // pred_region
      _
    $region17: #{tpu_custom_call.1} parent=1 // pred_fallthru
      _
    // Predicated region
    $region18: #{tpu_custom_call.1} parent=1 // pred_check
      _
    $region19: #{tpu_custom_call.1} parent=1 // pred_check_branch
      %41 = sbr.rel (0) target = $region21
    $region20: #{tpu_custom_call.1} parent=1 // pred_region
      %42 = dma.done [#allocation3], 256
    $region21: #{tpu_custom_call.1} parent=1 // pred_fallthru
      _
    // Predicated region
    $region22: #{tpu_custom_call.1} parent=1 // pred_check
      _
    $region23: #{tpu_custom_call.1} parent=1 // pred_check_branch
      %44 = sbr.rel (0) target = $region25
    $region24: #{tpu_custom_call.1} parent=1 // pred_region
      %45 = dma.done [#allocation6], 256
    $region25: #{tpu_custom_call.1} parent=1 // pred_fallthru
      _
    %v46 = vld [vmem:[%s0] sm:$0xff]
    %v47 = vld [vmem:[%s0 + $0x8] sm:$0xff]
    %v48 = vld [vmem:[%s3] sm:$0xff]
    %v49 = vld [vmem:[%s3 + $0x8] sm:$0xff]
    %v50 = vld [vmem:[#allocation2] sm:$0xff]
    %v51 = vld [vmem:[#allocation2 + $0x8] sm:$0xff]
    %v52 = vsub.f32 %v46, %v50
    %v53 = vsub.f32 %v47, %v51
    %v54 = vmul.f32 %v52, %v52
    %v55 = vmul.f32 %v53, %v53
    %vm56 = vcmask 261120
    %v57 = vsel %vm56, %v54, 0.0
    %58 = vadd.xlane.f32.xlu0 %v57
    %v59 = vpop.xlane.xlu0 %58
    %v60 = vsel %vm56, %v55, 0.0
    %61 = vadd.xlane.f32.xlu0 %v60
    %v62 = vpop.xlane.xlu0 %61
    %v63 = vrsqrt.pop %v59
    %v64 = vmul.f32 %v59, %v63
    %vm65 = vcmp.eq.f32.partialorder %v59, inf
    %v66 = vsel %vm65, %v59, %v64
    %vm67 = vcmp.eq.f32.partialorder %v59, 0.0
    %v68 = vand.u32 %v59, 2147483648
    %v69 = vsel %vm67, %v68, %v66
    %v70 = vrsqrt.pop %v62
    %v71 = vmul.f32 %v62, %v70
    %vm72 = vcmp.eq.f32.partialorder %v62, inf
    %v73 = vsel %vm72, %v62, %v71
    %vm74 = vcmp.eq.f32.partialorder %v62, 0.0
    %v75 = vand.u32 %v62, 2147483648
    %v76 = vsel %vm74, %v75, %v73
    %v77 = vmul.f32 %v69, %v48
    %v78 = vmul.f32 %v76, %v49
    %vm79 = vcmask 7168
    %v80 = vsel %vm79, %v77, 0.0
    %v81 = vsel %vm79, %v78, 0.0
    %v82 = vadd.f32 %v80, %v81
    %83 = vadd.xlane.f32.xlu0 %v82
    %v84 = vpop.xlane.xlu0 %83
    %v85 = vrot.slane %v84, 4
    %v86 = vadd.f32 %v84, %v85
    %v87 = vrot.slane %v86, 2
    %v88 = vadd.f32 %v86, %v87
    %v89 = vrot.slane %v88, 1
    %v90 = vadd.f32 %v88, %v89
    %s91 = vtos %v90
    %v92 = vld [vmem:[#allocation5] sm:$0xff]
    %v93 = vld [vmem:[#allocation5 + $0x8] sm:$0xff]
    %v94 = vsub.f32 %v46, %v92
    %v95 = vsub.f32 %v47, %v93
    %v96 = vmul.f32 %v94, %v94
    %v97 = vmul.f32 %v95, %v95
    %v98 = vsel %vm56, %v96, 0.0
    %99 = vadd.xlane.f32.xlu0 %v98
    %v100 = vpop.xlane.xlu0 %99
    %v101 = vsel %vm56, %v97, 0.0
    %102 = vadd.xlane.f32.xlu0 %v101
    %v103 = vpop.xlane.xlu0 %102
    %v104 = vrsqrt.pop %v100
    %v105 = vmul.f32 %v100, %v104
    %vm106 = vcmp.eq.f32.partialorder %v100, inf
    %v107 = vsel %vm106, %v100, %v105
    %vm108 = vcmp.eq.f32.partialorder %v100, 0.0
    %v109 = vand.u32 %v100, 2147483648
    %v110 = vsel %vm108, %v109, %v107
    %v111 = vrsqrt.pop %v103
    %v112 = vmul.f32 %v103, %v111
    %vm113 = vcmp.eq.f32.partialorder %v103, inf
    %v114 = vsel %vm113, %v103, %v112
    %vm115 = vcmp.eq.f32.partialorder %v103, 0.0
    %v116 = vand.u32 %v103, 2147483648
    %v117 = vsel %vm115, %v116, %v114
    %v118 = vsub.f32 1.0, %v110
    %v119 = vsub.f32 1.0, %v117
    %v120 = vmax.f32 %v118, 0.0
    %v121 = vmax.f32 %v119, 0.0
    %v122 = vmul.f32 %v120, %v48
    %v123 = vmul.f32 %v121, %v49
    %126 = vrot.lane.b32.xlu0 %v122, 127
    %v127 = vpop.permute.xlu0 %126
    %128 = vrot.lane.b32.xlu0 %v123, 127
    %v129 = vpop.permute.xlu0 %128
    %v132 = vsel %vm79, %v127, 0.0
    %v133 = vsel %vm79, %v129, 0.0
    %v134 = vadd.f32 %v132, %v133
    %135 = vadd.xlane.f32.xlu0 %v134
    %v136 = vpop.xlane.xlu0 %135
    %v137 = vrot.slane %v136, 4
    %v138 = vadd.f32 %v136, %v137
    %v139 = vrot.slane %v138, 2
    %v140 = vadd.f32 %v138, %v139
    %v141 = vrot.slane %v140, 1
    %v142 = vadd.f32 %v140, %v141
    %s143 = vtos %v142
    %v144 = vlaneseq
    %v145 = vand.u32 %v144, 127
    %vm146 = vcmp.eq.s32.totalorder %v145, 0
    %vm147 = vcmp.eq.s32.totalorder %v145, 1
    %v148 = vstv %s143
    %v149 = vsel %vm147, %v148, 0.0
    %v150 = vstv %s91
    %v151 = vsel %vm146, %v150, %v149
    %152 = vst [vmem:[#allocation7] sm:$0xff] %v151
    // Predicated region
    $region26: #{tpu_custom_call.1} parent=1 // pred_check
      _
    $region27: #{tpu_custom_call.1} parent=1 // pred_check_branch
      %154 = sbr.rel (0) target = $region29
    $region28: #{tpu_custom_call.1} parent=1 // pred_region
      %s156 = ssub.s32 128, 128
      %157 = vsyncadd [#allocation4], %s156
      %s159 = sshll.u32 [#allocation7], 4
      %s160 = int_to_ptr.vmem [resolvable:$true] %s159
      %162 = dma.vmem_to_hbm [thread:$0]  %s160, 128, %s4, [#allocation4]
    $region29: #{tpu_custom_call.1} parent=1 // pred_fallthru
      _
    // Predicated region
    $region30: #{tpu_custom_call.1} parent=1 // pred_check
      _
    $region31: #{tpu_custom_call.1} parent=1 // pred_check_branch
      %164 = sbr.rel (0) target = $region33
    $region32: #{tpu_custom_call.1} parent=1 // pred_region
      %165 = dma.done [#allocation4], 128
    $region33: #{tpu_custom_call.1} parent=1 // pred_fallthru
      _
    %166 = vsyncpa [#allocation3], 1
    %167 = vsyncpa [#allocation6], 1
    %168 = vsyncpa [#allocation4], 1

</llo_original>
